<compile_context>
chip_gen: v5e
topology: v5e:2x2
jax: 0.10.0
libtpu: 0.0.40
codegen_flags: <defaults>
</compile_context>

<pallas_src>
import functools

import jax
import jax.numpy as jnp
from jax.experimental import pallas as pl
from jax.experimental.pallas import tpu as pltpu


# ----------------------------------------------------------------------------
# Fused kernel: BCE-with-logits + synthetic-generator matmul + MSE -> 1 scalar
# ----------------------------------------------------------------------------
def _fused_total_loss_kernel(logits_ref, labels_ref, h_ref, w_ref, b_ref, v_ref,
                             out_ref, *, gamma_r):
    # ---- instance_bce_with_logits(logits, a) ----
    x = logits_ref[...].astype(jnp.float32)
    y = labels_ref[...].astype(jnp.float32)
    # numerically stable BCE-with-logits (PyTorch formulation), log1p for
    # better behavior at large |x|:
    #   max(x, 0) - x*y + log1p(exp(-|x|))
    per_elem = jnp.maximum(x, 0.0) - x * y + jnp.log1p(jnp.exp(-jnp.abs(x)))
    # mean over all elements * labels.size(1)  ==  sum / B
    loss_model = jnp.sum(per_elem) * jnp.float32(1.0 / x.shape[0])

    # ---- generator G(h) = h @ W_perm + b_perm (MXU), fused MSE vs v ----
    g = (jnp.dot(h_ref[...].astype(jnp.float32),
                 w_ref[...].astype(jnp.float32),
                 preferred_element_type=jnp.float32)
         + b_ref[...].astype(jnp.float32))
    diff = g - v_ref[...].astype(jnp.float32)
    n_rec = v_ref.shape[0] * v_ref.shape[1]
    loss_rec = jnp.sum(diff * diff) * jnp.float32(1.0 / n_rec)

    out_ref[0, 0] = loss_model + jnp.float32(gamma_r) * loss_rec


def fused_total_loss(logits, labels, h, w_perm, b_perm, v_flat, gamma_r):
    assert logits.ndim == 2 and logits.shape == labels.shape
    assert v_flat.ndim == 2 and w_perm.shape[1] == v_flat.shape[1]
    kernel = functools.partial(_fused_total_loss_kernel, gamma_r=float(gamma_r))
    out = pl.pallas_call(
        kernel,
        out_shape=jax.ShapeDtypeStruct((1, 1), jnp.float32),
        in_specs=[
            pl.BlockSpec(memory_space=pltpu.VMEM),  # logits
            pl.BlockSpec(memory_space=pltpu.VMEM),  # labels
            pl.BlockSpec(memory_space=pltpu.VMEM),  # h
            pl.BlockSpec(memory_space=pltpu.VMEM),  # W (column-permuted)
            pl.BlockSpec(memory_space=pltpu.VMEM),  # b (column-permuted)
            pl.BlockSpec(memory_space=pltpu.VMEM),  # v flattened (B, K*D)
        ],
        out_specs=pl.BlockSpec(memory_space=pltpu.SMEM),
    )(logits, labels, h, w_perm, b_perm, v_flat)
    return out[0, 0]


# ----------------------------------------------------------------------------
# BCE-only kernel (used when reconstruction/MSE branch is not active)
# ----------------------------------------------------------------------------
def _bce_only_kernel(logits_ref, labels_ref, out_ref):
    x = logits_ref[...].astype(jnp.float32)
    y = labels_ref[...].astype(jnp.float32)
    per_elem = jnp.maximum(x, 0.0) - x * y + jnp.log1p(jnp.exp(-jnp.abs(x)))
    out_ref[0, 0] = jnp.sum(per_elem) * jnp.float32(1.0 / x.shape[0])


def instance_bce_with_logits(logits, labels):
    assert logits.ndim == 2
    out = pl.pallas_call(
        _bce_only_kernel,
        out_shape=jax.ShapeDtypeStruct((1, 1), jnp.float32),
        in_specs=[
            pl.BlockSpec(memory_space=pltpu.VMEM),
            pl.BlockSpec(memory_space=pltpu.VMEM),
        ],
        out_specs=pl.BlockSpec(memory_space=pltpu.SMEM),
    )(logits, labels)
    return out[0, 0]


# ----------------------------------------------------------------------------
# TotalLoss wrapper (forward semantics of the PyTorch module)
# ----------------------------------------------------------------------------
class TotalLoss:
    def __init__(self, reconstruction, adv_mode, g_params, gamma_r, gamma_a,
                 k_regions, d_feat, adv=False, d_training=True):
        self.reconstruction = reconstruction
        self.adv_mode = adv_mode
        self.adv = adv
        self.gamma_r = float(gamma_r)
        self.gamma_a = float(gamma_a)
        self.d_training = d_training  # stands in for self.D.training
        self.K = k_regions            # number of regions (36 = 6*6)
        self.D = d_feat               # per-region feature dim

        # Synthetic linear generator parameters in their ORIGINAL ordering:
        # W: (H, D*K) producing a (B, D, 6, 6)-flattened output (D-major).
        # Fold the v.permute(0,2,1) into the weights ONCE: permute W/b columns
        # so the generator emits directly in v's natural (B, K*D) flatten
        # order (K-major).  w_perm[:, k*D + d] = w[:, d*K + k].
        w, b = g_params
        H = w.shape[0]
        self.w_perm = (w.reshape(H, self.D, self.K)
                         .transpose(0, 2, 1)
                         .reshape(H, self.K * self.D))
        self.b_perm = (b.reshape(1, self.D, self.K)
                         .transpose(0, 2, 1)
                         .reshape(1, self.K * self.D))

    def forward(self, inputs, v, a):
        logits, h = inputs
        g_loss = 0.0  # adversarial branch disabled (adv=False)

        if self.reconstruction and self.d_training:
            if self.adv:
                # TODO(synk): run_wgan/run_waae adversarial training not translatable.
                raise NotImplementedError("adversarial branch not supported")
            if self.adv_mode == "waae":
                B, K, D = v.shape
                assert K == self.K and D == self.D
                # pure reshape, no transpose — ordering matched by w_perm/b_perm
                v_flat = v.reshape(B, K * D)
                total = fused_total_loss(
                    logits, a, h, self.w_perm, self.b_perm, v_flat, self.gamma_r
                )
                return total + self.gamma_a * g_loss

        loss_model = instance_bce_with_logits(logits, a)
        return loss_model + self.gamma_a * g_loss


# ----------------------------------------------------------------------------
# Pure-JAX reference (uses the ORIGINAL W/b ordering and explicit permute)
# ----------------------------------------------------------------------------
def _reference_total_loss(logits, a, h, v, w, b, gamma_r, gamma_a):
    x = logits.astype(jnp.float32)
    y = a.astype(jnp.float32)
    bce = jnp.mean(jnp.maximum(x, 0.0) - x * y + jnp.log1p(jnp.exp(-jnp.abs(x))))
    loss_model = bce * x.shape[1]
    B, K, D = v.shape
    v_nchw = jnp.transpose(v, (0, 2, 1)).reshape(B, D, 6, 6)
    g_rec = (h @ w + b).reshape(B, D, 6, 6)
    loss_rec = jnp.mean((g_rec - v_nchw) ** 2)
    return loss_model + gamma_r * loss_rec + gamma_a * 0.0


if __name__ == "__main__":
    # small shapes: batch=8, answers=128, hidden=32, regions K=36 (=6*6), feat D=4
    B, NUM_ANS, H, K, D = 8, 128, 32, 36, 4

    key = jax.random.PRNGKey(0)
    k_logits, k_a, k_h, k_v, k_w, k_b = jax.random.split(key, 6)

    logits = jax.random.normal(k_logits, (B, NUM_ANS), dtype=jnp.float32)
    a = jax.random.uniform(k_a, (B, NUM_ANS), dtype=jnp.float32)  # soft labels
    h = jax.random.normal(k_h, (B, H), dtype=jnp.float32)
    v = jax.random.normal(k_v, (B, K, D), dtype=jnp.float32)

    # deterministic synthetic generator parameters (original D-major ordering)
    w_g = jax.random.normal(k_w, (H, D * K), dtype=jnp.float32) * 0.05
    b_g = jax.random.normal(k_b, (1, D * K), dtype=jnp.float32) * 0.05

    total_loss = TotalLoss(
        reconstruction=True, adv_mode="waae", g_params=(w_g, b_g),
        gamma_r=1.0, gamma_a=1.0, k_regions=K, d_feat=D,
        adv=False, d_training=True,
    )

    out = total_loss.forward((logits, h), v, a)
    out = jax.block_until_ready(out)

    ref = _reference_total_loss(logits, a, h, v, w_g, b_g, 1.0, 1.0)
    assert jnp.allclose(out, ref, rtol=1e-3, atol=1e-3), (out, ref)

    print("KERNEL_OK")
</pallas_src>

<mosaic_0001>
module attributes {stable_mosaic.version = 11 : i64} {
  func.func @_fused_total_loss_kernel(%arg0: memref<8x128xf32, #tpu.memory_space<vmem>>, %arg1: memref<8x128xf32, #tpu.memory_space<vmem>>, %arg2: memref<8x32xf32, #tpu.memory_space<vmem>>, %arg3: memref<32x144xf32, #tpu.memory_space<vmem>>, %arg4: memref<1x144xf32, #tpu.memory_space<vmem>>, %arg5: memref<8x144xf32, #tpu.memory_space<vmem>>, %arg6: memref<1x1xf32, #tpu.memory_space<smem>>) attributes {dimension_semantics = [], scalar_prefetch = 0 : i64, scratch_operands = 0 : i64, tpu.core_type = #tpu.core_type<tc>} {
    %c0 = arith.constant 0 : index
    %c0_0 = arith.constant 0 : index
    %0 = vector.load %arg0[%c0, %c0_0] : memref<8x128xf32, #tpu.memory_space<vmem>>, vector<8x128xf32>
    %c0_1 = arith.constant 0 : index
    %c0_2 = arith.constant 0 : index
    %1 = vector.load %arg1[%c0_1, %c0_2] : memref<8x128xf32, #tpu.memory_space<vmem>>, vector<8x128xf32>
    %cst = arith.constant 0.000000e+00 : f32
    %2 = vector.broadcast %cst : f32 to vector<8x128xf32>
    %3 = arith.maximumf %0, %2 : vector<8x128xf32>
    %4 = arith.mulf %0, %1 : vector<8x128xf32>
    %5 = arith.subf %3, %4 : vector<8x128xf32>
    %6 = math.absf %0 : vector<8x128xf32>
    %cst_3 = arith.constant 0.000000e+00 : f32
    %7 = vector.broadcast %cst_3 : f32 to vector<8x128xf32>
    %8 = arith.subf %7, %6 : vector<8x128xf32>
    %9 = math.exp %8 : vector<8x128xf32>
    %10 = math.log1p %9 : vector<8x128xf32>
    %11 = arith.addf %5, %10 : vector<8x128xf32>
    %12 = vector.shape_cast %11 : vector<8x128xf32> to vector<1x8x128xf32>
    %cst_4 = arith.constant dense<0.000000e+00> : vector<1xf32>
    %13 = vector.multi_reduction <add>, %12, %cst_4 [1, 2] : vector<1x8x128xf32> to vector<1xf32>
    %14 = vector.shape_cast %13 : vector<1xf32> to vector<1x1x1xf32>
    %15 = vector.extract %14[0, 0, 0] : f32 from vector<1x1x1xf32>
    %cst_5 = arith.constant 1.250000e-01 : f32
    %16 = arith.mulf %15, %cst_5 : f32
    %c0_6 = arith.constant 0 : index
    %c0_7 = arith.constant 0 : index
    %17 = vector.load %arg2[%c0_6, %c0_7] : memref<8x32xf32, #tpu.memory_space<vmem>>, vector<8x32xf32>
    %c0_8 = arith.constant 0 : index
    %c0_9 = arith.constant 0 : index
    %18 = vector.load %arg3[%c0_8, %c0_9] : memref<32x144xf32, #tpu.memory_space<vmem>>, vector<32x144xf32>
    %cst_10 = arith.constant dense<0.000000e+00> : vector<8x144xf32>
    %19 = tpu.matmul %17, %18, %cst_10 {dimension_numbers = #tpu.dot_dimension_numbers<[1], [0], [0], [1], [0, 0, 1, 1], [], []>} : vector<8x32xf32>, vector<32x144xf32>, vector<8x144xf32> -> vector<8x144xf32>
    %c0_11 = arith.constant 0 : index
    %c0_12 = arith.constant 0 : index
    %20 = vector.load %arg4[%c0_11, %c0_12] : memref<1x144xf32, #tpu.memory_space<vmem>>, vector<1x144xf32>
    %21 = vector.broadcast %20 : vector<1x144xf32> to vector<8x144xf32>
    %22 = arith.addf %19, %21 : vector<8x144xf32>
    %c0_13 = arith.constant 0 : index
    %c0_14 = arith.constant 0 : index
    %23 = vector.load %arg5[%c0_13, %c0_14] : memref<8x144xf32, #tpu.memory_space<vmem>>, vector<8x144xf32>
    %24 = arith.subf %22, %23 : vector<8x144xf32>
    %25 = arith.mulf %24, %24 : vector<8x144xf32>
    %26 = vector.shape_cast %25 : vector<8x144xf32> to vector<1x8x144xf32>
    %cst_15 = arith.constant dense<0.000000e+00> : vector<1xf32>
    %27 = vector.multi_reduction <add>, %26, %cst_15 [1, 2] : vector<1x8x144xf32> to vector<1xf32>
    %28 = vector.shape_cast %27 : vector<1xf32> to vector<1x1x1xf32>
    %29 = vector.extract %28[0, 0, 0] : f32 from vector<1x1x1xf32>
    %cst_16 = arith.constant 8.68055562E-4 : f32
    %30 = arith.mulf %29, %cst_16 : f32
    %cst_17 = arith.constant 1.000000e+00 : f32
    %31 = arith.mulf %cst_17, %30 : f32
    %32 = arith.addf %16, %31 : f32
    %c0_18 = arith.constant 0 : index
    %c0_19 = arith.constant 0 : index
    %33 = memref.load %arg6[%c0_18, %c0_19] : memref<1x1xf32, #tpu.memory_space<smem>>
    memref.store %32, %arg6[%c0_18, %c0_19] : memref<1x1xf32, #tpu.memory_space<smem>>
    return
  }
}

</mosaic_0001>

<llo_original>
// kernel: tpu_custom_call.1
$region0: #{tpu_custom_call.1}
  #allocation0 [shape = 'u32[]', space=smem, size = 0x4, offset = 0x4, fixed_abs, tag = 'smem constant byte address 0x4 - core index']
  #allocation1 [shape = 'u32[72,128]{1,0:T(1,128)}', space=vmem, size = 0x9000, scoped, tag = 'internal scratch']
  %s0 = inlined_call_operand.hbm [shape: f32[8,128], index: 0, kind: input, shape index: {}]
  %s1 = inlined_call_operand.hbm [shape: f32[8,128], index: 1, kind: input, shape index: {}]
  %s2 = inlined_call_operand.hbm [shape: f32[8,32], index: 2, kind: input, shape index: {}]
  %s3 = inlined_call_operand.hbm [shape: f32[32,144], index: 3, kind: input, shape index: {}]
  %s4 = inlined_call_operand.vmem [shape: f32[1,144], index: 4, kind: input, shape index: {}]
  %s5 = inlined_call_operand.hbm [shape: f32[8,144], index: 5, kind: input, shape index: {}]
  %s6 = inlined_call_operand.hbm [shape: f32[1,1], index: 6, kind: output, shape index: {}]
  %s7 = sld [smem:[#allocation0]]
  $region54: #{tpu_custom_call.1} parent=0
    _
  %s9 = ssub.s32 1, %s7
  %s10 = scalar_select 0, %s9, %s7
  $region1: #{tpu_custom_call.1} parent=0
    #allocation2 [shape = 'u8[4096]{0}', space=vmem, size = 0x1000, scoped, tag = 'input window, operand 0, single buffered']
    #allocation3 [shape = 's32[1]{0}', space=sflag, size = 0x4, scoped, tag = 'scoped memory for tpu_custom_call.1']
    #allocation4 [shape = 's32[1]{0}', space=sflag, size = 0x4, scoped, tag = 'scoped memory for tpu_custom_call.1']
    #allocation5 [shape = 'u8[4096]{0}', space=vmem, size = 0x1000, scoped, tag = 'input window, operand 1, single buffered']
    #allocation6 [shape = 's32[1]{0}', space=sflag, size = 0x4, scoped, tag = 'scoped memory for tpu_custom_call.1']
    #allocation7 [shape = 'u8[4096]{0}', space=vmem, size = 0x1000, scoped, tag = 'input window, operand 2, single buffered']
    #allocation8 [shape = 'u8[32768]{0}', space=vmem, size = 0x8000, scoped, tag = 'input window, operand 3, single buffered']
    #allocation9 [shape = 's32[1]{0}', space=sflag, size = 0x4, scoped, tag = 'scoped memory for tpu_custom_call.1']
    #allocation10 [shape = 'u8[8192]{0}', space=vmem, size = 0x2000, scoped, tag = 'input window, operand 5, single buffered']
    #allocation11 [shape = 'u8[512]{0}', space=smem, size = 0x200, scoped, tag = 'output window, operand 0, single buffered']
    %11 = vsyncpa [#allocation3], 0
    %12 = vsyncpa [#allocation6], 0
    %13 = vsyncpa [#allocation9], 0
    %14 = vsyncpa [#allocation4], 0
    // Predicated region
    $region2: #{tpu_custom_call.1} parent=1 // pred_check
      _
    $region3: #{tpu_custom_call.1} parent=1 // pred_check_branch
      %16 = sbr.rel (0) target = $region5
    $region4: #{tpu_custom_call.1} parent=1 // pred_region
      %18 = vsyncadd [#allocation3], 0
      %s20 = sshll.u32 %s0, 4
      %s21 = int_to_ptr.hbm [resolvable:$true] %s20
      %s22 = sshll.u32 [#allocation2], 4
      %s23 = int_to_ptr.vmem [resolvable:$true] %s22
      %25 = dma.hbm_to_vmem [thread:$0]  %s21, 128, %s23, [#allocation3]
    $region5: #{tpu_custom_call.1} parent=1 // pred_fallthru
      _
    // Predicated region
    $region6: #{tpu_custom_call.1} parent=1 // pred_check
      _
    $region7: #{tpu_custom_call.1} parent=1 // pred_check_branch
      %27 = sbr.rel (0) target = $region9
    $region8: #{tpu_custom_call.1} parent=1 // pred_region
      %29 = vsyncadd [#allocation6], 0
      %s31 = sshll.u32 %s1, 4
      %s32 = int_to_ptr.hbm [resolvable:$true] %s31
      %s33 = sshll.u32 [#allocation5], 4
      %s34 = int_to_ptr.vmem [resolvable:$true] %s33
      %36 = dma.hbm_to_vmem [thread:$0]  %s32, 128, %s34, [#allocation6]
    $region9: #{tpu_custom_call.1} parent=1 // pred_fallthru
      _
    // Predicated region
    $region10: #{tpu_custom_call.1} parent=1 // pred_check
      _
    $region11: #{tpu_custom_call.1} parent=1 // pred_check_branch
      %38 = sbr.rel (0) target = $region13
    $region12: #{tpu_custom_call.1} parent=1 // pred_region
      %40 = vsyncadd [#allocation6], 0
      %s42 = sshll.u32 %s2, 4
      %s43 = int_to_ptr.hbm [resolvable:$true] %s42
      %s44 = sshll.u32 [#allocation7], 4
      %s45 = int_to_ptr.vmem [resolvable:$true] %s44
      %47 = dma.hbm_to_vmem [thread:$0]  %s43, 128, %s45, [#allocation6]
    $region13: #{tpu_custom_call.1} parent=1 // pred_fallthru
      _
    // Predicated region
    $region14: #{tpu_custom_call.1} parent=1 // pred_check
      _
    $region15: #{tpu_custom_call.1} parent=1 // pred_check_branch
      %49 = sbr.rel (0) target = $region17
    $region16: #{tpu_custom_call.1} parent=1 // pred_region
      %51 = vsyncadd [#allocation9], 0
      %s52 = sshll.u32 %s3, 4
      %s53 = int_to_ptr.hbm [resolvable:$true] %s52
      %s54 = sshll.u32 [#allocation8], 4
      %s55 = int_to_ptr.vmem [resolvable:$true] %s54
      %60 = dma.hbm_to_vmem [thread:$0]  %s53, 1024, %s55, [#allocation9], 256, 256, 16
    $region17: #{tpu_custom_call.1} parent=1 // pred_fallthru
      _
    // Predicated region
    $region18: #{tpu_custom_call.1} parent=1 // pred_check
      _
    $region19: #{tpu_custom_call.1} parent=1 // pred_check_branch
      %62 = sbr.rel (0) target = $region21
    $region20: #{tpu_custom_call.1} parent=1 // pred_region
      _
    $region21: #{tpu_custom_call.1} parent=1 // pred_fallthru
      _
    // Predicated region
    $region22: #{tpu_custom_call.1} parent=1 // pred_check
      _
    $region23: #{tpu_custom_call.1} parent=1 // pred_check_branch
      %64 = sbr.rel (0) target = $region25
    $region24: #{tpu_custom_call.1} parent=1 // pred_region
      %66 = vsyncadd [#allocation9], 0
      %s68 = sshll.u32 %s5, 4
      %s69 = int_to_ptr.hbm [resolvable:$true] %s68
      %s70 = sshll.u32 [#allocation10], 4
      %s71 = int_to_ptr.vmem [resolvable:$true] %s70
      %73 = dma.hbm_to_vmem [thread:$0]  %s69, 256, %s71, [#allocation9]
    $region25: #{tpu_custom_call.1} parent=1 // pred_fallthru
      _
    // Predicated region
    $region26: #{tpu_custom_call.1} parent=1 // pred_check
      _
    $region27: #{tpu_custom_call.1} parent=1 // pred_check_branch
      %75 = sbr.rel (0) target = $region29
    $region28: #{tpu_custom_call.1} parent=1 // pred_region
      %77 = dma.done [#allocation3], 128
    $region29: #{tpu_custom_call.1} parent=1 // pred_fallthru
      _
    // Predicated region
    $region30: #{tpu_custom_call.1} parent=1 // pred_check
      _
    $region31: #{tpu_custom_call.1} parent=1 // pred_check_branch
      %79 = sbr.rel (0) target = $region33
    $region32: #{tpu_custom_call.1} parent=1 // pred_region
      %81 = dma.done [#allocation6], 128
    $region33: #{tpu_custom_call.1} parent=1 // pred_fallthru
      _
    // Predicated region
    $region34: #{tpu_custom_call.1} parent=1 // pred_check
      _
    $region35: #{tpu_custom_call.1} parent=1 // pred_check_branch
      %83 = sbr.rel (0) target = $region37
    $region36: #{tpu_custom_call.1} parent=1 // pred_region
      %85 = dma.done [#allocation6], 128
    $region37: #{tpu_custom_call.1} parent=1 // pred_fallthru
      _
    // Predicated region
    $region38: #{tpu_custom_call.1} parent=1 // pred_check
      _
    $region39: #{tpu_custom_call.1} parent=1 // pred_check_branch
      %87 = sbr.rel (0) target = $region41
    $region40: #{tpu_custom_call.1} parent=1 // pred_region
      %89 = dma.done [#allocation9], 1024
    $region41: #{tpu_custom_call.1} parent=1 // pred_fallthru
      _
    // Predicated region
    $region42: #{tpu_custom_call.1} parent=1 // pred_check
      _
    $region43: #{tpu_custom_call.1} parent=1 // pred_check_branch
      %91 = sbr.rel (0) target = $region45
    $region44: #{tpu_custom_call.1} parent=1 // pred_region
      %93 = dma.done [#allocation9], 256
    $region45: #{tpu_custom_call.1} parent=1 // pred_fallthru
      _
    %v94 = vld [vmem:[#allocation2] sm:$0xff]
    %v95 = vld [vmem:[#allocation5] sm:$0xff]
    %v96 = vmax.f32 %v94, 0.0
    %v97 = vmul.f32 %v94, %v95
    %v98 = vsub.f32 %v96, %v97
    %v99 = vand.u32 2147483647, %v94
    %v100 = vsub.f32 0.0, %v99
    %v101 = vmul.f32 %v100, 1.442695
    %v102 = vpow.pop %v101
    %v103 = vadd.f32 %v102, 1.0
    %v104 = vlog2.pop %v103
    %v105 = vmul.f32 %v104, 0.6931472
    %v106 = vmul.f32 -0.5, %v102
    %v107 = vadd.f32 %v106, 1.0
    %v108 = vmul.f32 %v107, %v102
    %v109 = vand.u32 2147483647, %v102
    %vm110 = vcmp.lt.f32.partialorder %v109, 0.0004427343
    %v111 = vsel %vm110, %v108, %v105
    %v112 = vadd.f32 %v98, %v111
    %113 = vadd.xlane.f32.xlu0 %v112
    %v114 = vpop.xlane.xlu0 %113
    %v115 = vrot.slane %v114, 4
    %v116 = vadd.f32 %v114, %v115
    %v117 = vrot.slane %v116, 2
    %v118 = vadd.f32 %v116, %v117
    %v119 = vrot.slane %v118, 1
    %v120 = vadd.f32 %v118, %v119
    %s121 = vtos %v120
    %s122 = smul.f32 %s121, 0.125
    %v123 = vld [vmem:[#allocation7] sm:$0xff]
    %v124 = vld [vmem:[#allocation8] sm:$0xff]
    %v125 = vld [vmem:[#allocation8 + $0x8] sm:$0xff]
    %v126 = vld [vmem:[#allocation8 + $0x10] sm:$0xff]
    %v127 = vld [vmem:[#allocation8 + $0x18] sm:$0xff]
    %v128 = vld [vmem:[#allocation8 + $0x20] sm:$0xff]
    %v129 = vld [vmem:[#allocation8 + $0x28] sm:$0xff]
    %v130 = vld [vmem:[#allocation8 + $0x30] sm:$0xff]
    %v131 = vld [vmem:[#allocation8 + $0x38] sm:$0xff]
    %v132 = vld [vmem:[%s4] sm:$0x3]
    %v134 = vperm.slane %v132, 0
    %v135 = vperm.slane %v132, 1
    %vm138 = vcmask 261120
    %v140 = vsel %vm138, %v123, 0
    %142 = vmatpush.msra.mxu0 0.0
    %143 = vmatpush.msra.mxu0 0.0
    %144 = vmatpush.msra.mxu0 0.0
    %145 = vmatpush.msra.mxu0 0.0
    %146 = vmatpush.msra.mxu0 0.0
    %147 = vmatpush.msra.mxu0 0.0
    %148 = vmatpush.msra.mxu0 0.0
    %149 = vmatpush.msra.mxu0 0.0
    %150 = vmatpush.msra.mxu0 0.0
    %151 = vmatpush.msra.mxu0 0.0
    %152 = vmatpush.msra.mxu0 0.0
    %153 = vmatpush.msra.mxu0 0.0
    %154 = vmatpush.msra.mxu0 %v130
    %155 = vmatpush.msra.mxu0 %v128
    %156 = vmatpush.msra.mxu0 %v126
    %157 = vmatpush.msra.mxu0 %v124
    %158 = vmatmul.f32.gmra.mxu0 %v140
    %v159 = vpop.f32.mrf.mxu0
    %v160 = vadd.f32 %v134, %v159
    %161 = vdwg.mxu0
    %162 = vmatpush.msra.mxu0 0.0
    %163 = vmatpush.msra.mxu0 0.0
    %164 = vmatpush.msra.mxu0 0.0
    %165 = vmatpush.msra.mxu0 0.0
    %166 = vmatpush.msra.mxu0 0.0
    %167 = vmatpush.msra.mxu0 0.0
    %168 = vmatpush.msra.mxu0 0.0
    %169 = vmatpush.msra.mxu0 0.0
    %170 = vmatpush.msra.mxu0 0.0
    %171 = vmatpush.msra.mxu0 0.0
    %172 = vmatpush.msra.mxu0 0.0
    %173 = vmatpush.msra.mxu0 0.0
    %174 = vmatpush.msra.mxu0 %v131
    %175 = vmatpush.msra.mxu0 %v129
    %176 = vmatpush.msra.mxu0 %v127
    %177 = vmatpush.msra.mxu0 %v125
    %178 = vmatmul.f32.gmra.mxu0 %v140
    %v179 = vpop.f32.mrf.mxu0
    %v180 = vadd.f32 %v135, %v179
    %181 = vdwg.mxu0
    %v182 = vld [vmem:[#allocation10] sm:$0xff]
    %v183 = vld [vmem:[#allocation10 + $0x8] sm:$0xff]
    %v184 = vsub.f32 %v160, %v182
    %v185 = vsub.f32 %v180, %v183
    %v186 = vmul.f32 %v184, %v184
    %v187 = vmul.f32 %v185, %v185
    %vm188 = vcmask 130048
    %v189 = vsel %vm188, %v187, 0.0
    %v190 = vadd.f32 %v186, %v189
    %191 = vadd.xlane.f32.xlu0 %v190
    %v192 = vpop.xlane.xlu0 %191
    %v193 = vrot.slane %v192, 4
    %v194 = vadd.f32 %v192, %v193
    %v195 = vrot.slane %v194, 2
    %v196 = vadd.f32 %v194, %v195
    %v197 = vrot.slane %v196, 1
    %v198 = vadd.f32 %v196, %v197
    %s199 = vtos %v198
    %s200 = smul.f32 %s199, 0.00086805556
    %s201 = sadd.f32 %s122, %s200
    %s202 = scalar_lea.smem [#allocation11], 0
    %203 = sst [smem:[%s202]] %s201
    // Predicated region
    $region46: #{tpu_custom_call.1} parent=1 // pred_check
      _
    $region47: #{tpu_custom_call.1} parent=1 // pred_check_branch
      %205 = sbr.rel (0) target = $region49
    $region48: #{tpu_custom_call.1} parent=1 // pred_region
      %207 = vsyncadd [#allocation4], 0
      %s209 = sshll.u32 %s6, 4
      %s210 = int_to_ptr.hbm [resolvable:$true] %s209
      %212 = dma.smem_to_hbm [#allocation11], 16, %s210, [#allocation4]
    $region49: #{tpu_custom_call.1} parent=1 // pred_fallthru
      _
    // Predicated region
    $region50: #{tpu_custom_call.1} parent=1 // pred_check
      _
    $region51: #{tpu_custom_call.1} parent=1 // pred_check_branch
      %214 = sbr.rel (0) target = $region53
    $region52: #{tpu_custom_call.1} parent=1 // pred_region
      %216 = dma.done [#allocation4], 16
    $region53: #{tpu_custom_call.1} parent=1 // pred_fallthru
      _
    %217 = sfence
    %218 = vsyncpa [#allocation3], 1
    %219 = vsyncpa [#allocation6], 1
    %220 = vsyncpa [#allocation9], 1
    %221 = vsyncpa [#allocation4], 1

</llo_original>
